<compile_context>
chip_gen: v7x
topology: tpu7x:2x2x1
jax: 0.10.0
libtpu: 0.0.40
codegen_flags: <defaults>
</compile_context>

<pallas_src>
import jax
import jax.numpy as jnp
from jax.experimental import pallas as pl
from jax.experimental.pallas import tpu as pltpu


def encoder_kernel(a_ref, x_ref,
                   wemb_ref, bemb_ref,
                   w1_ref, b1_ref,
                   w2_ref, b2_ref,
                   w3_ref, b3_ref,
                   out_ref):
    gb, n, _ = a_ref.shape          # static block shape: gb graphs, N nodes
    d = x_ref.shape[-1]
    inv_n = 1.0 / float(n)

    a = a_ref[...]                  # (gb, N, N) bf16 adjacency (0/1 exact)
    x = x_ref[...]                  # (gb, N, D) bf16 node features

    # --- normalize(adjacency): D^{-1} A, folded into cheap row scaling -------
    a_f = a.astype(jnp.float32)                                   # VPU cast
    deg = jnp.sum(a_f, axis=-1, keepdims=True)                    # (gb, N, 1)
    inv_deg = jnp.where(deg > 0.0, 1.0 / deg, 0.0)                # exact, tiny

    # A_norm @ X == (A @ X) * inv_deg : one batched bf16 MXU matmul, f32 acc
    ax = jnp.einsum("bij,bjd->bid", a, x,
                    preferred_element_type=jnp.float32)           # (gb, N, D)
    msgs = ax * inv_deg                                           # (gb, N, D) f32

    # --- GCN embedding layer on the stacked (gb*N, D) matrix -----------------
    m2 = msgs.reshape(gb * n, d).astype(jnp.bfloat16)             # leading-dim reshape
    h2 = jnp.dot(m2, wemb_ref[...], preferred_element_type=jnp.float32)
    h2 = jnp.maximum(h2 + bemb_ref[...], 0.0)                     # (gb*N, D) f32
    h = h2.reshape(gb, n, d)                                      # (gb, N, D) f32

    # --- MeanPooling: mean_rows(A_norm @ H) == (col-mean of A_norm) @ H ------
    # One-row MXU matmuls waste the systolic array; do VPU multiply + reduce.
    pool_w = jnp.sum(a_f * inv_deg, axis=1) * inv_n               # (gb, N) f32
    g = jnp.sum(pool_w[:, :, None] * h, axis=1)                   # (gb, D) f32

    # --- prediction block MLP (bf16 operands, f32 accumulation) --------------
    h1 = jnp.maximum(
        jnp.dot(g.astype(jnp.bfloat16), w1_ref[...],
                preferred_element_type=jnp.float32) + b1_ref[...], 0.0)
    hm = jnp.maximum(
        jnp.dot(h1.astype(jnp.bfloat16), w2_ref[...],
                preferred_element_type=jnp.float32) + b2_ref[...], 0.0)
    out = (jnp.dot(hm.astype(jnp.bfloat16), w3_ref[...],
                   preferred_element_type=jnp.float32) + b3_ref[...])  # (gb, O)
    out_ref[0] = out


def _pick_graphs_per_block(G, N, D, itemsize=2, vmem_budget_bytes=12 << 20):
    """Power-of-two divisor of G: fits VMEM, prefers >=2 grid steps (v7x 2 TCs)
    and gb*N >= 128 MXU rows when achievable."""
    pow2_divs = [g for g in (128, 64, 32, 16, 8, 4, 2, 1) if g <= G and G % g == 0]

    def fits(gb):
        # double-buffered bf16 adjacency + feature blocks
        return 2 * gb * N * (N + D) * itemsize <= vmem_budget_bytes

    for gb in pow2_divs:                       # fill MXU rows AND keep 2+ steps
        if fits(gb) and G // gb >= 2 and gb * N >= 128:
            return gb
    for gb in pow2_divs:                       # keep 2+ grid steps (megacore)
        if fits(gb) and G // gb >= 2:
            return gb
    for gb in pow2_divs:                       # whatever fits
        if fits(gb):
            return gb
    return 1


def encoder_forward(adj, feats, params):
    G, N, _ = adj.shape
    D = feats.shape[-1]
    Hd = params["w1"].shape[-1]
    O = params["w3"].shape[-1]

    gb = _pick_graphs_per_block(G, N, D)
    n_blocks = G // gb

    # bf16 inputs: halves adjacency/feature DMA bytes (0/1 adjacency is exact);
    # bf16 weights: MXU-native, no per-grid-step re-cast. Biases stay f32
    # (added to the f32 accumulator).
    adj_bf = adj.astype(jnp.bfloat16)
    feats_bf = feats.astype(jnp.bfloat16)
    wemb = params["w_emb"].astype(jnp.bfloat16)
    w1 = params["w1"].astype(jnp.bfloat16)
    w2 = params["w2"].astype(jnp.bfloat16)
    w3 = params["w3"].astype(jnp.bfloat16)

    def const_spec(shape):
        idx = lambda g: (0, 0)
        if hasattr(pl, "Buffered"):
            try:  # revisited constants: single buffer halves their VMEM use
                return pl.BlockSpec(shape, idx, pipeline_mode=pl.Buffered(1))
            except TypeError:
                pass
        return pl.BlockSpec(shape, idx)

    grid_spec = pltpu.PrefetchScalarGridSpec(
        num_scalar_prefetch=0,
        grid=(n_blocks,),
        in_specs=[
            pl.BlockSpec((gb, N, N), lambda g: (g, 0, 0)),   # adjacency block
            pl.BlockSpec((gb, N, D), lambda g: (g, 0, 0)),   # feature block
            const_spec((D, D)), const_spec((1, D)),          # GCN weight / bias
            const_spec((D, Hd)), const_spec((1, Hd)),        # pred layer 1
            const_spec((Hd, Hd)), const_spec((1, Hd)),       # pred layer 2
            const_spec((Hd, O)), const_spec((1, O)),         # pred output layer
        ],
        # 3-D output so the block's last two dims always equal the array dims
        # (valid for any gb, including gb == 1).
        out_specs=pl.BlockSpec((1, gb, O), lambda g: (g, 0, 0)),
    )

    out = pl.pallas_call(
        encoder_kernel,
        out_shape=jax.ShapeDtypeStruct((n_blocks, gb, O), jnp.float32),
        grid_spec=grid_spec,
        compiler_params=pltpu.CompilerParams(
            dimension_semantics=("parallel",),
            vmem_limit_bytes=32 * 1024 * 1024),
    )(adj_bf, feats_bf,
      wemb, params["b_emb"],
      w1, params["b1"],
      w2, params["b2"],
      w3, params["b3"])
    return out.reshape(G, O)


def encoder_reference(adj, feats, params):
    """Pure-JAX f32 reference matching the original module semantics."""
    deg = jnp.sum(adj, axis=-1, keepdims=True)
    a_norm = jnp.where(deg > 0, adj / deg, 0.0)
    m = jnp.einsum("bij,bjd->bid", a_norm, feats)
    h = jnp.maximum(jnp.einsum("bnd,de->bne", m, params["w_emb"]) + params["b_emb"],
                    0.0)
    p = jnp.einsum("bij,bjd->bid", a_norm, h)
    g = jnp.mean(p, axis=1)
    h1 = jnp.maximum(g @ params["w1"] + params["b1"], 0.0)
    h2 = jnp.maximum(h1 @ params["w2"] + params["b2"], 0.0)
    return h2 @ params["w3"] + params["b3"]


def init_params(key, D, H, O):
    ks = jax.random.split(key, 8)
    scale = 0.1
    return {
        "w_emb": (jax.random.normal(ks[0], (D, D)) * scale).astype(jnp.float32),
        "b_emb": (jax.random.normal(ks[1], (1, D)) * scale).astype(jnp.float32),
        "w1":    (jax.random.normal(ks[2], (D, H)) * scale).astype(jnp.float32),
        "b1":    (jax.random.normal(ks[3], (1, H)) * scale).astype(jnp.float32),
        "w2":    (jax.random.normal(ks[4], (H, H)) * scale).astype(jnp.float32),
        "b2":    (jax.random.normal(ks[5], (1, H)) * scale).astype(jnp.float32),
        "w3":    (jax.random.normal(ks[6], (H, O)) * scale).astype(jnp.float32),
        "b3":    (jax.random.normal(ks[7], (1, O)) * scale).astype(jnp.float32),
    }


if __name__ == "__main__":
    # G graphs, N nodes each, input_dimension D, pred_hidden_dimension H,
    # output_dimension O
    G, N, D, H, O = 2, 16, 32, 32, 8

    key = jax.random.PRNGKey(0)
    k_adj, k_feat, k_par = jax.random.split(key, 3)

    # symmetric 0/1 adjacency with self loops (every node has degree >= 1)
    raw = jax.random.uniform(k_adj, (G, N, N))
    adj = ((raw + jnp.swapaxes(raw, 1, 2)) > 1.0).astype(jnp.float32)
    adj = jnp.maximum(adj, jnp.eye(N, dtype=jnp.float32)[None])

    feats = jax.random.normal(k_feat, (G, N, D), dtype=jnp.float32)
    params = init_params(k_par, D, H, O)

    out = encoder_forward(adj, feats, params)
    out = jax.block_until_ready(out)
    assert out.shape == (G, O) and out.dtype == jnp.float32

    # tolerance: kernel uses bf16 MXU operands / bf16 features, f32 accumulation
    ref = encoder_reference(adj, feats, params)
    assert jnp.allclose(out, ref, atol=2e-2, rtol=5e-2), (
        f"max abs diff {float(jnp.max(jnp.abs(out - ref)))}")

    print("KERNEL_OK")
</pallas_src>

<mosaic_0001>
module attributes {stable_mosaic.version = 11 : i64} {
  func.func @encoder_kernel(%arg0: i32, %arg1: memref<1x16x16xbf16, #tpu.memory_space<vmem>>, %arg2: memref<1x16x32xbf16, #tpu.memory_space<vmem>>, %arg3: memref<32x32xbf16, #tpu.memory_space<vmem>>, %arg4: memref<1x32xf32, #tpu.memory_space<vmem>>, %arg5: memref<32x32xbf16, #tpu.memory_space<vmem>>, %arg6: memref<1x32xf32, #tpu.memory_space<vmem>>, %arg7: memref<32x32xbf16, #tpu.memory_space<vmem>>, %arg8: memref<1x32xf32, #tpu.memory_space<vmem>>, %arg9: memref<32x8xbf16, #tpu.memory_space<vmem>>, %arg10: memref<1x8xf32, #tpu.memory_space<vmem>>, %arg11: memref<1x1x8xf32, #tpu.memory_space<vmem>>) attributes {dimension_semantics = [#tpu.dimension_semantics<parallel>], iteration_bounds = array<i64: 2>, scalar_prefetch = 0 : i64, scratch_operands = 0 : i64, tpu.core_type = #tpu.core_type<tc>, window_params = [{transform_indices = @transform_0, window_bounds = array<i64: 1, 16, 16>}, {transform_indices = @transform_1, window_bounds = array<i64: 1, 16, 32>}, {pipeline_mode = #tpu.pipeline_mode<synchronous>, transform_indices = @transform_2, window_bounds = array<i64: 32, 32>}, {pipeline_mode = #tpu.pipeline_mode<synchronous>, transform_indices = @transform_3, window_bounds = array<i64: 1, 32>}, {pipeline_mode = #tpu.pipeline_mode<synchronous>, transform_indices = @transform_4, window_bounds = array<i64: 32, 32>}, {pipeline_mode = #tpu.pipeline_mode<synchronous>, transform_indices = @transform_5, window_bounds = array<i64: 1, 32>}, {pipeline_mode = #tpu.pipeline_mode<synchronous>, transform_indices = @transform_6, window_bounds = array<i64: 32, 32>}, {pipeline_mode = #tpu.pipeline_mode<synchronous>, transform_indices = @transform_7, window_bounds = array<i64: 1, 32>}, {pipeline_mode = #tpu.pipeline_mode<synchronous>, transform_indices = @transform_8, window_bounds = array<i64: 32, 8>}, {pipeline_mode = #tpu.pipeline_mode<synchronous>, transform_indices = @transform_9, window_bounds = array<i64: 1, 8>}, {transform_indices = @transform_10, window_bounds = array<i64: 1, 1, 8>}]} {
    %c0 = arith.constant 0 : index
    %c0_0 = arith.constant 0 : index
    %c0_1 = arith.constant 0 : index
    %0 = vector.load %arg1[%c0, %c0_0, %c0_1] : memref<1x16x16xbf16, #tpu.memory_space<vmem>>, vector<1x16x16xbf16>
    %c0_2 = arith.constant 0 : index
    %c0_3 = arith.constant 0 : index
    %c0_4 = arith.constant 0 : index
    %1 = vector.load %arg2[%c0_2, %c0_3, %c0_4] : memref<1x16x32xbf16, #tpu.memory_space<vmem>>, vector<1x16x32xbf16>
    %2 = arith.extf %0 : vector<1x16x16xbf16> to vector<1x16x16xf32>
    %cst = arith.constant dense<0.000000e+00> : vector<1x16xf32>
    %3 = vector.multi_reduction <add>, %2, %cst [2] : vector<1x16x16xf32> to vector<1x16xf32>
    %4 = vector.shape_cast %3 : vector<1x16xf32> to vector<1x16x1xf32>
    %cst_5 = arith.constant 0.000000e+00 : f32
    %5 = vector.broadcast %cst_5 : f32 to vector<1x16x1xf32>
    %6 = arith.cmpf ogt, %4, %5 : vector<1x16x1xf32>
    %cst_6 = arith.constant 1.000000e+00 : f32
    %7 = vector.broadcast %cst_6 : f32 to vector<1x16x1xf32>
    %8 = arith.divf %7, %4 : vector<1x16x1xf32>
    %cst_7 = arith.constant 0.000000e+00 : f32
    %9 = vector.broadcast %cst_7 : f32 to vector<1x16x1xf32>
    %10 = arith.select %6, %8, %9 : vector<1x16x1xi1>, vector<1x16x1xf32>
    "tpu.trace_start"() <{level = 10 : i32, message = "bij,bjd->bid"}> : () -> ()
    %cst_8 = arith.constant dense<0.000000e+00> : vector<1x16x32xf32>
    %11 = tpu.matmul %0, %1, %cst_8 {dimension_numbers = #tpu.dot_dimension_numbers<[2], [1], [1], [2], [0, 0, 0, 1, 1, 2], [0], [0]>} : vector<1x16x16xbf16>, vector<1x16x32xbf16>, vector<1x16x32xf32> -> vector<1x16x32xf32>
    "tpu.trace_stop"() : () -> ()
    %12 = vector.broadcast %10 : vector<1x16x1xf32> to vector<1x16x32xf32>
    %13 = arith.mulf %11, %12 : vector<1x16x32xf32>
    %14 = vector.shape_cast %13 : vector<1x16x32xf32> to vector<16x32xf32>
    %15 = arith.truncf %14 : vector<16x32xf32> to vector<16x32xbf16>
    %c0_9 = arith.constant 0 : index
    %c0_10 = arith.constant 0 : index
    %16 = vector.load %arg3[%c0_9, %c0_10] : memref<32x32xbf16, #tpu.memory_space<vmem>>, vector<32x32xbf16>
    %cst_11 = arith.constant dense<0.000000e+00> : vector<16x32xf32>
    %17 = tpu.matmul %15, %16, %cst_11 {dimension_numbers = #tpu.dot_dimension_numbers<[1], [0], [0], [1], [0, 0, 1, 1], [], []>} : vector<16x32xbf16>, vector<32x32xbf16>, vector<16x32xf32> -> vector<16x32xf32>
    %c0_12 = arith.constant 0 : index
    %c0_13 = arith.constant 0 : index
    %18 = vector.load %arg4[%c0_12, %c0_13] : memref<1x32xf32, #tpu.memory_space<vmem>>, vector<1x32xf32>
    %19 = vector.broadcast %18 : vector<1x32xf32> to vector<16x32xf32>
    %20 = arith.addf %17, %19 : vector<16x32xf32>
    %cst_14 = arith.constant 0.000000e+00 : f32
    %21 = vector.broadcast %cst_14 : f32 to vector<16x32xf32>
    %22 = arith.maximumf %20, %21 : vector<16x32xf32>
    %23 = vector.shape_cast %22 : vector<16x32xf32> to vector<1x16x32xf32>
    %24 = vector.broadcast %10 : vector<1x16x1xf32> to vector<1x16x16xf32>
    %25 = arith.mulf %2, %24 : vector<1x16x16xf32>
    %cst_15 = arith.constant dense<0.000000e+00> : vector<1x16xf32>
    %26 = vector.multi_reduction <add>, %25, %cst_15 [1] : vector<1x16x16xf32> to vector<1x16xf32>
    %cst_16 = arith.constant 6.250000e-02 : f32
    %27 = vector.broadcast %cst_16 : f32 to vector<1x16xf32>
    %28 = arith.mulf %26, %27 : vector<1x16xf32>
    %29 = vector.shape_cast %28 : vector<1x16xf32> to vector<1x16x1xf32>
    %30 = vector.broadcast %29 : vector<1x16x1xf32> to vector<1x16x32xf32>
    %31 = arith.mulf %30, %23 : vector<1x16x32xf32>
    %cst_17 = arith.constant dense<0.000000e+00> : vector<1x32xf32>
    %32 = vector.multi_reduction <add>, %31, %cst_17 [1] : vector<1x16x32xf32> to vector<1x32xf32>
    %33 = arith.truncf %32 : vector<1x32xf32> to vector<1x32xbf16>
    %c0_18 = arith.constant 0 : index
    %c0_19 = arith.constant 0 : index
    %34 = vector.load %arg5[%c0_18, %c0_19] : memref<32x32xbf16, #tpu.memory_space<vmem>>, vector<32x32xbf16>
    %cst_20 = arith.constant dense<0.000000e+00> : vector<1x32xf32>
    %35 = tpu.matmul %33, %34, %cst_20 {dimension_numbers = #tpu.dot_dimension_numbers<[1], [0], [0], [1], [0, 0, 1, 1], [], []>} : vector<1x32xbf16>, vector<32x32xbf16>, vector<1x32xf32> -> vector<1x32xf32>
    %c0_21 = arith.constant 0 : index
    %c0_22 = arith.constant 0 : index
    %36 = vector.load %arg6[%c0_21, %c0_22] : memref<1x32xf32, #tpu.memory_space<vmem>>, vector<1x32xf32>
    %37 = arith.addf %35, %36 : vector<1x32xf32>
    %cst_23 = arith.constant 0.000000e+00 : f32
    %38 = vector.broadcast %cst_23 : f32 to vector<1x32xf32>
    %39 = arith.maximumf %37, %38 : vector<1x32xf32>
    %40 = arith.truncf %39 : vector<1x32xf32> to vector<1x32xbf16>
    %c0_24 = arith.constant 0 : index
    %c0_25 = arith.constant 0 : index
    %41 = vector.load %arg7[%c0_24, %c0_25] : memref<32x32xbf16, #tpu.memory_space<vmem>>, vector<32x32xbf16>
    %cst_26 = arith.constant dense<0.000000e+00> : vector<1x32xf32>
    %42 = tpu.matmul %40, %41, %cst_26 {dimension_numbers = #tpu.dot_dimension_numbers<[1], [0], [0], [1], [0, 0, 1, 1], [], []>} : vector<1x32xbf16>, vector<32x32xbf16>, vector<1x32xf32> -> vector<1x32xf32>
    %c0_27 = arith.constant 0 : index
    %c0_28 = arith.constant 0 : index
    %43 = vector.load %arg8[%c0_27, %c0_28] : memref<1x32xf32, #tpu.memory_space<vmem>>, vector<1x32xf32>
    %44 = arith.addf %42, %43 : vector<1x32xf32>
    %cst_29 = arith.constant 0.000000e+00 : f32
    %45 = vector.broadcast %cst_29 : f32 to vector<1x32xf32>
    %46 = arith.maximumf %44, %45 : vector<1x32xf32>
    %47 = arith.truncf %46 : vector<1x32xf32> to vector<1x32xbf16>
    %c0_30 = arith.constant 0 : index
    %c0_31 = arith.constant 0 : index
    %48 = vector.load %arg9[%c0_30, %c0_31] : memref<32x8xbf16, #tpu.memory_space<vmem>>, vector<32x8xbf16>
    %cst_32 = arith.constant dense<0.000000e+00> : vector<1x8xf32>
    %49 = tpu.matmul %47, %48, %cst_32 {dimension_numbers = #tpu.dot_dimension_numbers<[1], [0], [0], [1], [0, 0, 1, 1], [], []>} : vector<1x32xbf16>, vector<32x8xbf16>, vector<1x8xf32> -> vector<1x8xf32>
    %c0_33 = arith.constant 0 : index
    %c0_34 = arith.constant 0 : index
    %50 = vector.load %arg10[%c0_33, %c0_34] : memref<1x8xf32, #tpu.memory_space<vmem>>, vector<1x8xf32>
    %51 = arith.addf %49, %50 : vector<1x8xf32>
    %c0_35 = arith.constant 0 : index
    %c0_36 = arith.constant 0 : index
    %c0_37 = arith.constant 0 : index
    %52 = vector.load %arg11[%c0_35, %c0_36, %c0_37] : memref<1x1x8xf32, #tpu.memory_space<vmem>>, vector<1x1x8xf32>
    %53 = vector.shape_cast %52 : vector<1x1x8xf32> to vector<1x8xf32>
    %54 = vector.shape_cast %51 : vector<1x8xf32> to vector<1x1x8xf32>
    tpu.vector_store %arg11[%c0_35, %c0_36, %c0_37], %54 {strides = array<i32>} : memref<1x1x8xf32, #tpu.memory_space<vmem>>, vector<1x1x8xf32>,
    return
  }
  func.func @transform_0(%arg0: i32) -> (i32, i32, i32) {
    %c0_i32 = arith.constant 0 : i32
    %c0_i32_0 = arith.constant 0 : i32
    %c0_i32_1 = arith.constant 0 : i32
    return %arg0, %c0_i32, %c0_i32_0 : i32, i32, i32
  }
  func.func @transform_1(%arg0: i32) -> (i32, i32, i32) {
    %c0_i32 = arith.constant 0 : i32
    %c0_i32_0 = arith.constant 0 : i32
    %c0_i32_1 = arith.constant 0 : i32
    return %arg0, %c0_i32, %c0_i32_0 : i32, i32, i32
  }
  func.func @transform_2(%arg0: i32) -> (i32, i32) {
    %c0_i32 = arith.constant 0 : i32
    %c0_i32_0 = arith.constant 0 : i32
    %c0_i32_1 = arith.constant 0 : i32
    return %c0_i32, %c0_i32_0 : i32, i32
  }
  func.func @transform_3(%arg0: i32) -> (i32, i32) {
    %c0_i32 = arith.constant 0 : i32
    %c0_i32_0 = arith.constant 0 : i32
    %c0_i32_1 = arith.constant 0 : i32
    return %c0_i32, %c0_i32_0 : i32, i32
  }
  func.func @transform_4(%arg0: i32) -> (i32, i32) {
    %c0_i32 = arith.constant 0 : i32
    %c0_i32_0 = arith.constant 0 : i32
    %c0_i32_1 = arith.constant 0 : i32
    return %c0_i32, %c0_i32_0 : i32, i32
  }
  func.func @transform_5(%arg0: i32) -> (i32, i32) {
    %c0_i32 = arith.constant 0 : i32
    %c0_i32_0 = arith.constant 0 : i32
    %c0_i32_1 = arith.constant 0 : i32
    return %c0_i32, %c0_i32_0 : i32, i32
  }
  func.func @transform_6(%arg0: i32) -> (i32, i32) {
    %c0_i32 = arith.constant 0 : i32
    %c0_i32_0 = arith.constant 0 : i32
    %c0_i32_1 = arith.constant 0 : i32
    return %c0_i32, %c0_i32_0 : i32, i32
  }
  func.func @transform_7(%arg0: i32) -> (i32, i32) {
    %c0_i32 = arith.constant 0 : i32
    %c0_i32_0 = arith.constant 0 : i32
    %c0_i32_1 = arith.constant 0 : i32
    return %c0_i32, %c0_i32_0 : i32, i32
  }
  func.func @transform_8(%arg0: i32) -> (i32, i32) {
    %c0_i32 = arith.constant 0 : i32
    %c0_i32_0 = arith.constant 0 : i32
    %c0_i32_1 = arith.constant 0 : i32
    return %c0_i32, %c0_i32_0 : i32, i32
  }
  func.func @transform_9(%arg0: i32) -> (i32, i32) {
    %c0_i32 = arith.constant 0 : i32
    %c0_i32_0 = arith.constant 0 : i32
    %c0_i32_1 = arith.constant 0 : i32
    return %c0_i32, %c0_i32_0 : i32, i32
  }
  func.func @transform_10(%arg0: i32) -> (i32, i32, i32) {
    %c0_i32 = arith.constant 0 : i32
    %c0_i32_0 = arith.constant 0 : i32
    %c0_i32_1 = arith.constant 0 : i32
    return %arg0, %c0_i32, %c0_i32_0 : i32, i32, i32
  }
}

</mosaic_0001>

<llo_original>
// kernel: tpu_custom_call.1
$region0: #{tpu_custom_call.1}
  #allocation0 [shape = 'u32[]', space=smem, size = 0x4, offset = 0x4, fixed_abs, tag = 'smem constant byte address 0x4 - core index']
  #allocation1 [shape = 'u32[144,128]{1,0:T(1,128)}', space=vmem, size = 0x12000, scoped, tag = 'internal scratch']
  %s0 = inlined_call_operand.vmem [shape: bf16[2,16,16], index: 0, kind: input, shape index: {}]
  %s1 = inlined_call_operand.hbm [shape: bf16[2,16,32], index: 1, kind: input, shape index: {}]
  %s2 = inlined_call_operand.hbm [shape: bf16[32,32], index: 2, kind: input, shape index: {}]
  %s3 = inlined_call_operand.vmem [shape: f32[1,32], index: 3, kind: input, shape index: {}]
  %s4 = inlined_call_operand.vmem [shape: bf16[32,32], index: 4, kind: input, shape index: {}]
  %s5 = inlined_call_operand.vmem [shape: f32[1,32], index: 5, kind: input, shape index: {}]
  %s6 = inlined_call_operand.hbm [shape: bf16[32,32], index: 6, kind: input, shape index: {}]
  %s7 = inlined_call_operand.vmem [shape: f32[1,32], index: 7, kind: input, shape index: {}]
  %s8 = inlined_call_operand.vmem [shape: bf16[32,8], index: 8, kind: input, shape index: {}]
  %s9 = inlined_call_operand.vmem [shape: f32[1,8], index: 9, kind: input, shape index: {}]
  %s10 = inlined_call_operand.hbm [shape: f32[2,1,8], index: 10, kind: output, shape index: {}]
  %s11 = sld [smem:[#allocation0]]
  $region85: #{tpu_custom_call.1} parent=0
    _
  %s13 = ssub.s32 1, %s11
  %s14 = scalar_select 0, %s13, %s11
  $region1: #{tpu_custom_call.1} parent=0
    #allocation2 [shape = 'u8[8192]{0}', space=vmem, size = 0x2000, scoped, tag = 'input window, operand 1']
    #allocation3 [shape = 's32[2]{0}', space=sflag, size = 0x8, scoped, tag = 'scoped memory for tpu_custom_call.1']
    #allocation4 [shape = 's32[2]{0}', space=sflag, size = 0x8, scoped, tag = 'scoped memory for tpu_custom_call.1']
    #allocation5 [shape = 'u8[8192]{0}', space=vmem, size = 0x2000, scoped, tag = 'input window, operand 2, single buffered']
    #allocation6 [shape = 's32[1]{0}', space=sflag, size = 0x4, scoped, tag = 'scoped memory for tpu_custom_call.1']
    #allocation7 [shape = 'u8[8192]{0}', space=vmem, size = 0x2000, scoped, tag = 'input window, operand 6, single buffered']
    #allocation8 [shape = 'u8[1024]{0}', space=vmem, size = 0x400, scoped, tag = 'output window, operand 0']
    %15 = vsyncpa [#allocation3], 0
    %s16 = scalar_lea.sflag [#allocation3], 1
    %17 = vsyncpa %s16, 0
    %18 = vsyncpa [#allocation6], 0
    %19 = vsyncpa [#allocation4], 0
    %s20 = scalar_lea.sflag [#allocation4], 1
    %21 = vsyncpa %s20, 0
    loop: start=0, step=1, limit=4
    $region2: #{tpu_custom_call.1} parent=1 // loop_pre_header
      _
    $region3: #{tpu_custom_call.1} parent=1 // loop_header
      %s23 = sphi 0, %s27
      %p24 = scmp.ge.s32.totalorder %s23, 4
      %s33 = sphi 0, %s35
      %s36 = sphi 0, %s33
      %s37 = sphi 0, %s36
      %s53 = sphi 0, %s37
      %s59 = sphi 0, %s61
      %s62 = sphi 0, %s59
      %s63 = sphi 0, %s62
      %s79 = sphi 0, %s63
      %s83 = sphi 0, %s83
      %s85 = sphi 0, %s83
      %s86 = sphi 0, %s85
      %s100 = sphi 0, %s86
      %s104 = sphi 0, %s104
      %s106 = sphi 0, %s104
      %s107 = sphi 0, %s106
      %s121 = sphi 0, %s107
      %s125 = sphi 0, %s125
      %s127 = sphi 0, %s125
      %s128 = sphi 0, %s127
      %s142 = sphi 0, %s128
      %s146 = sphi 0, %s146
      %s148 = sphi 0, %s146
      %s149 = sphi 0, %s148
      %s163 = sphi 0, %s149
      %s167 = sphi 0, %s167
      %s169 = sphi 0, %s167
      %s170 = sphi 0, %s169
      %s184 = sphi 0, %s170
      %s188 = sphi 0, %s188
      %s190 = sphi 0, %s188
      %s191 = sphi 0, %s190
      %s205 = sphi 0, %s191
      %s209 = sphi 0, %s209
      %s211 = sphi 0, %s209
      %s212 = sphi 0, %s211
      %s226 = sphi 0, %s212
      %s230 = sphi 0, %s230
      %s232 = sphi 0, %s230
      %s233 = sphi 0, %s232
      %s247 = sphi 0, %s233
      %s253 = sphi 0, %s255
      %s256 = sphi 0, %s253
      %s257 = sphi 0, %s256
      %s273 = sphi 0, %s257
    $region4: #{tpu_custom_call.1} parent=1 // loop_header_branch
      %26 = sbr.rel (%p24) target = $region8
    $region5: #{tpu_custom_call.1} parent=1 // loop_body
      %s28 = ssub.s32 %s23, 1
      %s29 = ssub.s32 %s23, 2
      %s30 = sadd.s32 %s23, 1
      %s31 = ssub.s32 %s23, %s30
      %p32 = scmp.eq.s32.totalorder %s31, 0
      %s34 = sadd.s32 %s33, 1
      %s35 = scalar_select %p32, %s33, %s34
      %p38 = pneg %p32
      %p39 = scmp.eq.s32.totalorder %s23, 1
      %p40 = por %p38, %p39
      %p41 = scmp.ne.s32.totalorder %s33, %s36
      %p42 = scmp.eq.s32.totalorder %s23, 0
      %p43 = por %p41, %p42
      %p44 = scmp.ne.s32.totalorder %s33, %s36
      %p45 = scmp.eq.s32.totalorder %s28, 1
      %p46 = por %p44, %p45
      %p47 = scmp.ne.s32.totalorder %s36, %s37
      %p48 = scmp.eq.s32.totalorder %s28, 0
      %p49 = por %p47, %p48
      %p50 = scmp.ne.s32.totalorder %s36, %s37
      %p51 = scmp.eq.s32.totalorder %s29, 1
      %p52 = por %p50, %p51
      %p54 = scmp.ne.s32.totalorder %s37, %s53
      %p55 = scmp.eq.s32.totalorder %s29, 0
      %p56 = por %p54, %p55
      %s57 = ssub.s32 %s23, %s30
      %p58 = scmp.eq.s32.totalorder %s57, 0
      %s60 = sadd.s32 %s59, 1
      %s61 = scalar_select %p58, %s59, %s60
      %p64 = pneg %p58
      %p65 = scmp.eq.s32.totalorder %s23, 1
      %p66 = por %p64, %p65
      %p67 = scmp.ne.s32.totalorder %s59, %s62
      %p68 = scmp.eq.s32.totalorder %s23, 0
      %p69 = por %p67, %p68
      %p70 = scmp.ne.s32.totalorder %s59, %s62
      %p71 = scmp.eq.s32.totalorder %s28, 1
      %p72 = por %p70, %p71
      %p73 = scmp.ne.s32.totalorder %s62, %s63
      %p74 = scmp.eq.s32.totalorder %s28, 0
      %p75 = por %p73, %p74
      %p76 = scmp.ne.s32.totalorder %s62, %s63
      %p77 = scmp.eq.s32.totalorder %s29, 1
      %p78 = por %p76, %p77
      %p80 = scmp.ne.s32.totalorder %s63, %s79
      %p81 = scmp.eq.s32.totalorder %s29, 0
      %p82 = por %p80, %p81
      %s84 = sadd.s32 %s83, 1
      %p87 = scmp.eq.s32.totalorder %s23, 1
      %p88 = scmp.ne.s32.totalorder %s83, %s85
      %p89 = scmp.eq.s32.totalorder %s23, 0
      %p90 = por %p88, %p89
      %p91 = scmp.ne.s32.totalorder %s83, %s85
      %p92 = scmp.eq.s32.totalorder %s28, 1
      %p93 = por %p91, %p92
      %p94 = scmp.ne.s32.totalorder %s85, %s86
      %p95 = scmp.eq.s32.totalorder %s28, 0
      %p96 = por %p94, %p95
      %p97 = scmp.ne.s32.totalorder %s85, %s86
      %p98 = scmp.eq.s32.totalorder %s29, 1
      %p99 = por %p97, %p98
      %p101 = scmp.ne.s32.totalorder %s86, %s100
      %p102 = scmp.eq.s32.totalorder %s29, 0
      %p103 = por %p101, %p102
      %s105 = sadd.s32 %s104, 1
      %p108 = scmp.eq.s32.totalorder %s23, 1
      %p109 = scmp.ne.s32.totalorder %s104, %s106
      %p110 = scmp.eq.s32.totalorder %s23, 0
      %p111 = por %p109, %p110
      %p112 = scmp.ne.s32.totalorder %s104, %s106
      %p113 = scmp.eq.s32.totalorder %s28, 1
      %p114 = por %p112, %p113
      %p115 = scmp.ne.s32.totalorder %s106, %s107
      %p116 = scmp.eq.s32.totalorder %s28, 0
      %p117 = por %p115, %p116
      %p118 = scmp.ne.s32.totalorder %s106, %s107
      %p119 = scmp.eq.s32.totalorder %s29, 1
      %p120 = por %p118, %p119
      %p122 = scmp.ne.s32.totalorder %s107, %s121
      %p123 = scmp.eq.s32.totalorder %s29, 0
      %p124 = por %p122, %p123
      %s126 = sadd.s32 %s125, 1
      %p129 = scmp.eq.s32.totalorder %s23, 1
      %p130 = scmp.ne.s32.totalorder %s125, %s127
      %p131 = scmp.eq.s32.totalorder %s23, 0
      %p132 = por %p130, %p131
      %p133 = scmp.ne.s32.totalorder %s125, %s127
      %p134 = scmp.eq.s32.totalorder %s28, 1
      %p135 = por %p133, %p134
      %p136 = scmp.ne.s32.totalorder %s127, %s128
      %p137 = scmp.eq.s32.totalorder %s28, 0
      %p138 = por %p136, %p137
      %p139 = scmp.ne.s32.totalorder %s127, %s128
      %p140 = scmp.eq.s32.totalorder %s29, 1
      %p141 = por %p139, %p140
      %p143 = scmp.ne.s32.totalorder %s128, %s142
      %p144 = scmp.eq.s32.totalorder %s29, 0
      %p145 = por %p143, %p144
      %s147 = sadd.s32 %s146, 1
      %p150 = scmp.eq.s32.totalorder %s23, 1
      %p151 = scmp.ne.s32.totalorder %s146, %s148
      %p152 = scmp.eq.s32.totalorder %s23, 0
      %p153 = por %p151, %p152
      %p154 = scmp.ne.s32.totalorder %s146, %s148
      %p155 = scmp.eq.s32.totalorder %s28, 1
      %p156 = por %p154, %p155
      %p157 = scmp.ne.s32.totalorder %s148, %s149
      %p158 = scmp.eq.s32.totalorder %s28, 0
      %p159 = por %p157, %p158
      %p160 = scmp.ne.s32.totalorder %s148, %s149
      %p161 = scmp.eq.s32.totalorder %s29, 1
      %p162 = por %p160, %p161
      %p164 = scmp.ne.s32.totalorder %s149, %s163
      %p165 = scmp.eq.s32.totalorder %s29, 0
      %p166 = por %p164, %p165
      %s168 = sadd.s32 %s167, 1
      %p171 = scmp.eq.s32.totalorder %s23, 1
      %p172 = scmp.ne.s32.totalorder %s167, %s169
      %p173 = scmp.eq.s32.totalorder %s23, 0
      %p174 = por %p172, %p173
      %p175 = scmp.ne.s32.totalorder %s167, %s169
      %p176 = scmp.eq.s32.totalorder %s28, 1
      %p177 = por %p175, %p176
      %p178 = scmp.ne.s32.totalorder %s169, %s170
      %p179 = scmp.eq.s32.totalorder %s28, 0
      %p180 = por %p178, %p179
      %p181 = scmp.ne.s32.totalorder %s169, %s170
      %p182 = scmp.eq.s32.totalorder %s29, 1
      %p183 = por %p181, %p182
      %p185 = scmp.ne.s32.totalorder %s170, %s184
      %p186 = scmp.eq.s32.totalorder %s29, 0
      %p187 = por %p185, %p186
      %s189 = sadd.s32 %s188, 1
      %p192 = scmp.eq.s32.totalorder %s23, 1
      %p193 = scmp.ne.s32.totalorder %s188, %s190
      %p194 = scmp.eq.s32.totalorder %s23, 0
      %p195 = por %p193, %p194
      %p196 = scmp.ne.s32.totalorder %s188, %s190
      %p197 = scmp.eq.s32.totalorder %s28, 1
      %p198 = por %p196, %p197
      %p199 = scmp.ne.s32.totalorder %s190, %s191
      %p200 = scmp.eq.s32.totalorder %s28, 0
      %p201 = por %p199, %p200
      %p202 = scmp.ne.s32.totalorder %s190, %s191
      %p203 = scmp.eq.s32.totalorder %s29, 1
      %p204 = por %p202, %p203
      %p206 = scmp.ne.s32.totalorder %s191, %s205
      %p207 = scmp.eq.s32.totalorder %s29, 0
      %p208 = por %p206, %p207
      %s210 = sadd.s32 %s209, 1
      %p213 = scmp.eq.s32.totalorder %s23, 1
      %p214 = scmp.ne.s32.totalorder %s209, %s211
      %p215 = scmp.eq.s32.totalorder %s23, 0
      %p216 = por %p214, %p215
      %p217 = scmp.ne.s32.totalorder %s209, %s211
      %p218 = scmp.eq.s32.totalorder %s28, 1
      %p219 = por %p217, %p218
      %p220 = scmp.ne.s32.totalorder %s211, %s212
      %p221 = scmp.eq.s32.totalorder %s28, 0
      %p222 = por %p220, %p221
      %p223 = scmp.ne.s32.totalorder %s211, %s212
      %p224 = scmp.eq.s32.totalorder %s29, 1
      %p225 = por %p223, %p224
      %p227 = scmp.ne.s32.totalorder %s212, %s226
      %p228 = scmp.eq.s32.totalorder %s29, 0
      %p229 = por %p227, %p228
      %s231 = sadd.s32 %s230, 1
      %p234 = scmp.eq.s32.totalorder %s23, 1
      %p235 = scmp.ne.s32.totalorder %s230, %s232
      %p236 = scmp.eq.s32.totalorder %s23, 0
      %p237 = por %p235, %p236
      %p238 = scmp.ne.s32.totalorder %s230, %s232
      %p239 = scmp.eq.s32.totalorder %s28, 1
      %p240 = por %p238, %p239
      %p241 = scmp.ne.s32.totalorder %s232, %s233
      %p242 = scmp.eq.s32.totalorder %s28, 0
      %p243 = por %p241, %p242
      %p244 = scmp.ne.s32.totalorder %s232, %s233
      %p245 = scmp.eq.s32.totalorder %s29, 1
      %p246 = por %p244, %p245
      %p248 = scmp.ne.s32.totalorder %s233, %s247
      %p249 = scmp.eq.s32.totalorder %s29, 0
      %p250 = por %p248, %p249
      %s251 = ssub.s32 %s23, %s30
      %p252 = scmp.eq.s32.totalorder %s251, 0
      %s254 = sadd.s32 %s253, 1
      %s255 = scalar_select %p252, %s253, %s254
      %p258 = pneg %p252
      %p259 = scmp.eq.s32.totalorder %s23, 1
      %p260 = por %p258, %p259
      %p261 = scmp.ne.s32.totalorder %s253, %s256
      %p262 = scmp.eq.s32.totalorder %s23, 0
      %p263 = por %p261, %p262
      %p264 = scmp.ne.s32.totalorder %s253, %s256
      %p265 = scmp.eq.s32.totalorder %s28, 1
      %p266 = por %p264, %p265
      %p267 = scmp.ne.s32.totalorder %s256, %s257
      %p268 = scmp.eq.s32.totalorder %s28, 0
      %p269 = por %p267, %p268
      %p270 = scmp.ne.s32.totalorder %s256, %s257
      %p271 = scmp.eq.s32.totalorder %s29, 1
      %p272 = por %p270, %p271
      %p274 = scmp.ne.s32.totalorder %s257, %s273
      %p275 = scmp.eq.s32.totalorder %s29, 0
      %p276 = por %p274, %p275
      %p277 = scmp.le.s32.totalorder 1, %s23
      %p278 = scmp.lt.s32.totalorder %s23, 3
      %p279 = pnand %p277, %p278
      %p280 = pneg %p279
      // Predicated region
      $region9: #{tpu_custom_call.1} parent=5 // pred_check
        _
      $region10: #{tpu_custom_call.1} parent=5 // pred_check_branch
        %282 = sbr.rel (%p279) target = $region12
      $region11: #{tpu_custom_call.1} parent=5 // pred_region
        %s283 = ssub.s32 %s23, 1
        // Predicated region
        $region13: #{tpu_custom_call.1} parent=11 // pred_check
          %p284 = pneg %p96
        $region14: #{tpu_custom_call.1} parent=11 // pred_check_branch
          %286 = sbr.rel (%p284) target = $region16
        $region15: #{tpu_custom_call.1} parent=11 // pred_region
          %s288 = ssub.s32 256, 256
          %289 = vsyncadd [#allocation6], %s288
          %s290 = sshll.u32 [#allocation5], 4
          %s291 = int_to_ptr.vmem [resolvable:$true] %s290
          %296 = dma.hbm_to_vmem [thread:$0]  %s2, 256, %s291, [#allocation6], 64, 64, 4
        $region16: #{tpu_custom_call.1} parent=11 // pred_fallthru
          _
        // Predicated region
        $region17: #{tpu_custom_call.1} parent=11 // pred_check
          %p297 = pneg %p117
        $region18: #{tpu_custom_call.1} parent=11 // pred_check_branch
          %299 = sbr.rel (%p297) target = $region20
        $region19: #{tpu_custom_call.1} parent=11 // pred_region
          _
        $region20: #{tpu_custom_call.1} parent=11 // pred_fallthru
          _
        // Predicated region
        $region21: #{tpu_custom_call.1} parent=11 // pred_check
          %p300 = pneg %p138
        $region22: #{tpu_custom_call.1} parent=11 // pred_check_branch
          %302 = sbr.rel (%p300) target = $region24
        $region23: #{tpu_custom_call.1} parent=11 // pred_region
          _
        $region24: #{tpu_custom_call.1} parent=11 // pred_fallthru
          _
        // Predicated region
        $region25: #{tpu_custom_call.1} parent=11 // pred_check
          %p303 = pneg %p159
        $region26: #{tpu_custom_call.1} parent=11 // pred_check_branch
          %305 = sbr.rel (%p303) target = $region28
        $region27: #{tpu_custom_call.1} parent=11 // pred_region
          _
        $region28: #{tpu_custom_call.1} parent=11 // pred_fallthru
          _
        // Predicated region
        $region29: #{tpu_custom_call.1} parent=11 // pred_check
          %p306 = pneg %p180
        $region30: #{tpu_custom_call.1} parent=11 // pred_check_branch
          %308 = sbr.rel (%p306) target = $region32
        $region31: #{tpu_custom_call.1} parent=11 // pred_region
          %s310 = ssub.s32 256, 256
          %311 = vsyncadd [#allocation6], %s310
          %s312 = sshll.u32 [#allocation7], 4
          %s313 = int_to_ptr.vmem [resolvable:$true] %s312
          %318 = dma.hbm_to_vmem [thread:$0]  %s6, 256, %s313, [#allocation6], 64, 64, 4
        $region32: #{tpu_custom_call.1} parent=11 // pred_fallthru
          _
        // Predicated region
        $region33: #{tpu_custom_call.1} parent=11 // pred_check
          %p319 = pneg %p201
        $region34: #{tpu_custom_call.1} parent=11 // pred_check_branch
          %321 = sbr.rel (%p319) target = $region36
        $region35: #{tpu_custom_call.1} parent=11 // pred_region
          _
        $region36: #{tpu_custom_call.1} parent=11 // pred_fallthru
          _
        // Predicated region
        $region37: #{tpu_custom_call.1} parent=11 // pred_check
          %p322 = pneg %p222
        $region38: #{tpu_custom_call.1} parent=11 // pred_check_branch
          %324 = sbr.rel (%p322) target = $region40
        $region39: #{tpu_custom_call.1} parent=11 // pred_region
          _
        $region40: #{tpu_custom_call.1} parent=11 // pred_fallthru
          _
        // Predicated region
        $region41: #{tpu_custom_call.1} parent=11 // pred_check
          %p325 = pneg %p243
        $region42: #{tpu_custom_call.1} parent=11 // pred_check_branch
          %327 = sbr.rel (%p325) target = $region44
        $region43: #{tpu_custom_call.1} parent=11 // pred_region
          _
        $region44: #{tpu_custom_call.1} parent=11 // pred_fallthru
          _
      $region12: #{tpu_custom_call.1} parent=5 // pred_fallthru
        _
      %p328 = scmp.lt.s32.totalorder %s23, 2
      // Predicated region
      $region45: #{tpu_custom_call.1} parent=5 // pred_check
        %p329 = pneg %p328
      $region46: #{tpu_custom_call.1} parent=5 // pred_check_branch
        %331 = sbr.rel (%p329) target = $region48
      $region47: #{tpu_custom_call.1} parent=5 // pred_region
        // Predicated region
        $region49: #{tpu_custom_call.1} parent=47 // pred_check
          %p332 = pneg %p43
        $region50: #{tpu_custom_call.1} parent=47 // pred_check_branch
          %334 = sbr.rel (%p332) target = $region52
        $region51: #{tpu_custom_call.1} parent=47 // pred_region
          %p335 = scmp.lt.s32.totalorder %s23, 1
          %s336 = scalar_select %p335, %s23, 1
          %s337 = smul.addr %s336, 2
          %s338 = smul.addr %s337, 4
          %s339 = scalar_lea.vmem %s0, %s338
        $region52: #{tpu_custom_call.1} parent=47 // pred_fallthru
          _
        // Predicated region
        $region53: #{tpu_custom_call.1} parent=47 // pred_check
          %p340 = pneg %p69
        $region54: #{tpu_custom_call.1} parent=47 // pred_check_branch
          %342 = sbr.rel (%p340) target = $region56
        $region55: #{tpu_custom_call.1} parent=47 // pred_region
          %s343 = sand.u32 %s59, 1
          %s344 = scalar_lea.sflag [#allocation3], %s343
          %s345 = sand.u32 %s59, 1
          %s346 = smul.addr %s345, 8
          %s347 = scalar_lea.vmem [#allocation2], %s346
          %s349 = ssub.s32 128, 128
          %350 = vsyncadd %s344, %s349
          %s351 = smul.addr %s23, 2
          %s352 = smul.addr %s351, 64
          %s353 = scalar_lea.hbm %s1, %s352
          %s354 = sshll.u32 %s347, 4
          %s355 = int_to_ptr.vmem [resolvable:$true] %s354
          %360 = dma.hbm_to_vmem [thread:$0]  %s353, 128, %s355, %s344, 64, 64, 4
        $region56: #{tpu_custom_call.1} parent=47 // pred_fallthru
          _
      $region48: #{tpu_custom_call.1} parent=5 // pred_fallthru
        _
      %p361 = scmp.le.s32.totalorder 1, %s23
      %p362 = scmp.lt.s32.totalorder %s23, 3
      %p363 = pnand %p361, %p362
      %p364 = pneg %p363
      // Predicated region
      $region57: #{tpu_custom_call.1} parent=5 // pred_check
        _
      $region58: #{tpu_custom_call.1} parent=5 // pred_check_branch
        %366 = sbr.rel (%p363) target = $region60
      $region59: #{tpu_custom_call.1} parent=5 // pred_region
        %s367 = ssub.s32 %s23, 1
        %s368 = sand.u32 %s62, 1
        %s369 = scalar_lea.sflag [#allocation3], %s368
        %s370 = sand.u32 %s62, 1
        %s371 = smul.addr %s370, 8
        %s372 = scalar_lea.vmem [#allocation2], %s371
        // Predicated region
        $region61: #{tpu_custom_call.1} parent=59 // pred_check
          %p373 = pneg %p75
        $region62: #{tpu_custom_call.1} parent=59 // pred_check_branch
          %375 = sbr.rel (%p373) target = $region64
        $region63: #{tpu_custom_call.1} parent=59 // pred_region
          %376 = dma.done %s369, 128
        $region64: #{tpu_custom_call.1} parent=59 // pred_fallthru
          _
        // Predicated region
        $region65: #{tpu_custom_call.1} parent=59 // pred_check
          %p377 = pneg %p96
        $region66: #{tpu_custom_call.1} parent=59 // pred_check_branch
          %379 = sbr.rel (%p377) target = $region68
        $region67: #{tpu_custom_call.1} parent=59 // pred_region
          %380 = dma.done [#allocation6], 256
        $region68: #{tpu_custom_call.1} parent=59 // pred_fallthru
          _
        // Predicated region
        $region69: #{tpu_custom_call.1} parent=59 // pred_check
          %p381 = pneg %p180
        $region70: #{tpu_custom_call.1} parent=59 // pred_check_branch
          %383 = sbr.rel (%p381) target = $region72
        $region71: #{tpu_custom_call.1} parent=59 // pred_region
          %384 = dma.done [#allocation6], 256
        $region72: #{tpu_custom_call.1} parent=59 // pred_fallthru
          _
        %p385 = scmp.lt.s32.totalorder %s28, 1
        %s386 = scalar_select %p385, %s28, 1
        %s387 = smul.addr %s386, 2
        %s388 = smul.addr %s387, 4
        %s389 = scalar_lea.vmem %s0, %s388
        %p390 = pneg %p49
        %p391 = pneg %p46
        %s392 = sand.u32 %s62, 1
        %s393 = scalar_lea.sflag [#allocation3], %s392
        %s394 = sand.u32 %s62, 1
        %s395 = smul.addr %s394, 8
        %s396 = scalar_lea.vmem [#allocation2], %s395
        %p397 = pneg %p75
        %p398 = pneg %p72
        %p399 = pneg %p96
        %p400 = pneg %p93
        %p401 = pneg %p117
        %p402 = pneg %p114
        %p403 = pneg %p138
        %p404 = pneg %p135
        %p405 = pneg %p159
        %p406 = pneg %p156
        %p407 = pneg %p180
        %p408 = pneg %p177
        %p409 = pneg %p201
        %p410 = pneg %p198
        %p411 = pneg %p222
        %p412 = pneg %p219
        %p413 = pneg %p243
        %p414 = pneg %p240
        %p415 = pneg %p269
        %p416 = pneg %p266
        %s417 = sand.u32 %s256, 1
        %s418 = scalar_lea.sflag [#allocation4], %s417
        %s419 = sand.u32 %s256, 1
        %s420 = scalar_lea.vmem [#allocation8], %s419
        %p421 = scmp.lt.s32.totalorder %s28, 1
        %s422 = scalar_select %p421, %s28, 1
        %s423 = smul.addr %s422, 2
        %s424 = smul.addr %s423, 4
        %s425 = scalar_lea.vmem %s0, %s424
        %v427 = vld [vmem:[%s425] sm:$0xf]
        %v428 = vld [vmem:[%s425 + $0x4] sm:$0xf]
        %v429 = vld [vmem:[%s372] sm:$0xf]
        %v430 = vld [vmem:[%s372 + $0x4] sm:$0xf]
        %v431 = vunpack.c.l.bf16 %v427
        %v432 = vunpack.c.l.bf16 %v428
        %vm433 = vcmask 130048
        %v434 = vsel %vm433, %v431, 0.0
        %435 = vadd.xlane.f32.xlu0 %v434
        %v436 = vpop.xlane.xlu0 %435
        %v437 = vsel %vm433, %v432, 0.0
        %438 = vadd.xlane.f32.xlu0 %v437
        %v439 = vpop.xlane.xlu0 %438
        %vm440 = vcmp.gt.f32.partialorder %v436, 0.0
        %vm441 = vcmp.gt.f32.partialorder %v439, 0.0
        %v442 = vrcp.pop %v436
        %v443 = vmul.f32 1.0, %v442
        %v444 = vrcp.pop %v439
        %v445 = vmul.f32 1.0, %v444
        %v446 = vsel %vm440, %v443, 0.0
        %v447 = vsel %vm441, %v445, 0.0
        %v450 = vunpack.c.l.b16 %v427
        %v451 = vunpack.c.l.b16 %v428
        %v452 = vpack.c.b16 %v451, %v450
        %v455 = vunpack.c.l.b16 %v429
        %v456 = vunpack.c.l.b16 %v430
        %v457 = vpack.c.b16 %v456, %v455
        %v460 = vsel %vm433, %v452, 0
        %462 = vmatprep.subr.bf16.mxu0 0
        %463 = vmatpush1.bf16.msra.mxu0 %v457
        %464 = vmatprep.subr.bf16.mxu0 0
        %465 = vmatpush1.bf16.msra.mxu0 0
        %466 = vmatprep.subr.bf16.mxu0 0
        %467 = vmatpush1.bf16.msra.mxu0 0
        %468 = vmatprep.subr.bf16.mxu0 0
        %469 = vmatpush1.bf16.msra.mxu0 0
        %470 = vmatprep.subr.bf16.mxu0 0
        %471 = vmatpush1.bf16.msra.mxu0 0
        %472 = vmatprep.subr.bf16.mxu0 0
        %473 = vmatpush1.bf16.msra.mxu0 0
        %474 = vmatprep.subr.bf16.mxu0 0
        %475 = vmatpush1.bf16.msra.mxu0 0
        %476 = vmatprep.subr.bf16.mxu0 0
        %477 = vmatpush1.bf16.msra.mxu0 0
        %478 = vmatprep.subr.bf16.mxu0 0
        %479 = vmatpush1.bf16.msra.mxu0 0
        %480 = vmatprep.subr.bf16.mxu0 0
        %481 = vmatpush1.bf16.msra.mxu0 0
        %482 = vmatprep.subr.bf16.mxu0 0
        %483 = vmatpush1.bf16.msra.mxu0 0
        %484 = vmatprep.subr.bf16.mxu0 0
        %485 = vmatpush1.bf16.msra.mxu0 0
        %486 = vmatprep.subr.bf16.mxu0 0
        %487 = vmatpush1.bf16.msra.mxu0 0
        %488 = vmatprep.subr.bf16.mxu0 0
        %489 = vmatpush1.bf16.msra.mxu0 0
        %490 = vmatprep.subr.bf16.mxu0 0
        %491 = vmatpush1.bf16.msra.mxu0 0
        %492 = vmatprep.subr.bf16.mxu0 0
        %493 = vmatpush1.bf16.msra.mxu0 0
        %494 = vmatprep.mubr.bf16.mxu0 0
        %495 = vmatmul.mubr.bf16.gmra.mrb[0].mxu0 %v460
        %v496 = vpop.f32.mrb[0].mxu0
        %v497 = vadd.f32 0.0, %v496
        %v498 = vpop.f32.mrb[0].mxu0
        %v499 = vpop.f32.mrb[0].mxu0
        %v500 = vadd.f32 0.0, %v499
        %v501 = vpop.f32.mrb[0].mxu0
        %502 = vdwg.mxu0
        %v503 = vmul.f32 %v497, %v446
        %v504 = vmul.f32 %v500, %v447
        %v505 = vpack.c.bf16 %v504, %v503
        %v506 = vld [vmem:[#allocation5] sm:$0xf]
        %v507 = vld [vmem:[#allocation5 + $0x4] sm:$0xf]
        %v508 = vld [vmem:[#allocation5 + $0x8] sm:$0xf]
        %v509 = vld [vmem:[#allocation5 + $0xc] sm:$0xf]
        %v510 = vld [vmem:[%s3] sm:$0x1]
        %v512 = vlaneseq
        %v513 = vshrl.u32 %v512, 7
        %v514 = vsub.s32 0, %v513
        %v515 = vrot.slane %v510, %v514
        %v521 = vunpack.c.l.b16 %v506
        %v522 = vunpack.c.l.b16 %v507
        %v523 = vunpack.c.l.b16 %v508
        %v524 = vunpack.c.l.b16 %v509
        %v525 = vpack.c.b16 %v522, %v521
        %v526 = vpack.c.b16 %v524, %v523
        %vm529 = vcmask 261120
        %v531 = vsel %vm529, %v505, 0
        %533 = vmatprep.subr.bf16.mxu0 0
        %534 = vmatpush1.bf16.msra.mxu0 %v525
        %535 = vmatprep.subr.bf16.mxu0 0
        %536 = vmatpush1.bf16.msra.mxu0 %v526
        %537 = vmatprep.subr.bf16.mxu0 0
        %538 = vmatpush1.bf16.msra.mxu0 0
        %539 = vmatprep.subr.bf16.mxu0 0
        %540 = vmatpush1.bf16.msra.mxu0 0
        %541 = vmatprep.subr.bf16.mxu0 0
        %542 = vmatpush1.bf16.msra.mxu0 0
        %543 = vmatprep.subr.bf16.mxu0 0
        %544 = vmatpush1.bf16.msra.mxu0 0
        %545 = vmatprep.subr.bf16.mxu0 0
        %546 = vmatpush1.bf16.msra.mxu0 0
        %547 = vmatprep.subr.bf16.mxu0 0
        %548 = vmatpush1.bf16.msra.mxu0 0
        %549 = vmatprep.subr.bf16.mxu0 0
        %550 = vmatpush1.bf16.msra.mxu0 0
        %551 = vmatprep.subr.bf16.mxu0 0
        %552 = vmatpush1.bf16.msra.mxu0 0
        %553 = vmatprep.subr.bf16.mxu0 0
        %554 = vmatpush1.bf16.msra.mxu0 0
        %555 = vmatprep.subr.bf16.mxu0 0
        %556 = vmatpush1.bf16.msra.mxu0 0
        %557 = vmatprep.subr.bf16.mxu0 0
        %558 = vmatpush1.bf16.msra.mxu0 0
        %559 = vmatprep.subr.bf16.mxu0 0
        %560 = vmatpush1.bf16.msra.mxu0 0
        %561 = vmatprep.subr.bf16.mxu0 0
        %562 = vmatpush1.bf16.msra.mxu0 0
        %563 = vmatprep.subr.bf16.mxu0 0
        %564 = vmatpush1.bf16.msra.mxu0 0
        %565 = vmatprep.mubr.bf16.mxu0 0
        %566 = vmatmul.mubr.bf16.gmra.mrb[0].mxu0 %v531
        %v567 = vpop.f32.mrb[0].mxu0
        %v568 = vadd.f32 %v515, %v567
        %v569 = vpop.f32.mrb[0].mxu0
        %v570 = vpop.f32.mrb[0].mxu0
        %v571 = vadd.f32 %v515, %v570
        %v572 = vpop.f32.mrb[0].mxu0
        %573 = vdwg.mxu0
        %v574 = vmax.f32 %v568, 0.0
        %v575 = vmax.f32 %v571, 0.0
        %v576 = vmul.f32 %v431, %v446
        %v577 = vmul.f32 %v432, %v447
        %v578 = vsel %vm433, %v576, 0.0
        %v579 = vsel %vm433, %v577, 0.0
        %v580 = vadd.f32 %v578, %v579
        %v581 = vrot.slane %v580, 4
        %v582 = vadd.f32 %v580, %v581
        %v583 = vrot.slane %v582, 2
        %v584 = vadd.f32 %v582, %v583
        %v585 = vrot.slane %v584, 1
        %v586 = vadd.f32 %v584, %v585
        %v587 = vmul.f32 %v586, 0.0625
        %589 = vbcast.lane.b32.xlu0 %v587, 256
        %v590 = vpop.permute.xlu0 %589
        %s592 = sor.u32 256, 8
        %593 = vbcast.lane.b32.xlu0 %v587, %s592
        %v594 = vpop.permute.xlu0 %593
        %v595 = vmul.f32 %v590, %v574
        %v596 = vmul.f32 %v594, %v575
        %v597 = vsel %vm529, %v595, 0.0
        %v598 = vsel %vm529, %v596, 0.0
        %v599 = vadd.f32 %v597, %v598
        %v600 = vrot.slane %v599, 4
        %v601 = vadd.f32 %v599, %v600
        %v602 = vrot.slane %v601, 2
        %v603 = vadd.f32 %v601, %v602
        %v604 = vrot.slane %v603, 1
        %v605 = vadd.f32 %v603, %v604
        %v606 = vpack.c.bf16 %v605, %v605
        %v607 = vld [vmem:[%s4] sm:$0xf]
        %v608 = vld [vmem:[%s4 + $0x4] sm:$0xf]
        %v609 = vld [vmem:[%s4 + $0x8] sm:$0xf]
        %v610 = vld [vmem:[%s4 + $0xc] sm:$0xf]
        %v611 = vld [vmem:[%s5] sm:$0x1]
        %v616 = vunpack.c.l.b16 %v607
        %v617 = vunpack.c.l.b16 %v608
        %v618 = vunpack.c.l.b16 %v609
        %v619 = vunpack.c.l.b16 %v610
        %v620 = vpack.c.b16 %v617, %v616
        %v621 = vpack.c.b16 %v619, %v618
        %v625 = vsel %vm529, %v606, 0
        %627 = vmatprep.subr.bf16.mxu0 0
        %628 = vmatpush1.bf16.msra.mxu0 %v620
        %629 = vmatprep.subr.bf16.mxu0 0
        %630 = vmatpush1.bf16.msra.mxu0 %v621
        %631 = vmatprep.subr.bf16.mxu0 0
        %632 = vmatpush1.bf16.msra.mxu0 0
        %633 = vmatprep.subr.bf16.mxu0 0
        %634 = vmatpush1.bf16.msra.mxu0 0
        %635 = vmatprep.subr.bf16.mxu0 0
        %636 = vmatpush1.bf16.msra.mxu0 0
        %637 = vmatprep.subr.bf16.mxu0 0
        %638 = vmatpush1.bf16.msra.mxu0 0
        %639 = vmatprep.subr.bf16.mxu0 0
        %640 = vmatpush1.bf16.msra.mxu0 0
        %641 = vmatprep.subr.bf16.mxu0 0
        %642 = vmatpush1.bf16.msra.mxu0 0
        %643 = vmatprep.subr.bf16.mxu0 0
        %644 = vmatpush1.bf16.msra.mxu0 0
        %645 = vmatprep.subr.bf16.mxu0 0
        %646 = vmatpush1.bf16.msra.mxu0 0
        %647 = vmatprep.subr.bf16.mxu0 0
        %648 = vmatpush1.bf16.msra.mxu0 0
        %649 = vmatprep.subr.bf16.mxu0 0
        %650 = vmatpush1.bf16.msra.mxu0 0
        %651 = vmatprep.subr.bf16.mxu0 0
        %652 = vmatpush1.bf16.msra.mxu0 0
        %653 = vmatprep.subr.bf16.mxu0 0
        %654 = vmatpush1.bf16.msra.mxu0 0
        %655 = vmatprep.subr.bf16.mxu0 0
        %656 = vmatpush1.bf16.msra.mxu0 0
        %657 = vmatprep.subr.bf16.mxu0 0
        %658 = vmatpush1.bf16.msra.mxu0 0
        %659 = vmatprep.mubr.bf16.mxu0 0
        %660 = vmatmul.mubr.bf16.gmra.mrb[0].mxu0 %v625
        %v661 = vpop.f32.mrb[0].mxu0
        %v662 = vadd.f32 %v611, %v661
        %v663 = vpop.f32.mrb[0].mxu0
        %v664 = vpop.f32.mrb[0].mxu0
        %v665 = vpop.f32.mrb[0].mxu0
        %666 = vdwg.mxu0
        %v667 = vmax.f32 %v662, 0.0
        %v668 = vpack.c.bf16 %v667, %v667
        %v669 = vld [vmem:[#allocation7] sm:$0xf]
        %v670 = vld [vmem:[#allocation7 + $0x4] sm:$0xf]
        %v671 = vld [vmem:[#allocation7 + $0x8] sm:$0xf]
        %v672 = vld [vmem:[#allocation7 + $0xc] sm:$0xf]
        %v673 = vld [vmem:[%s7] sm:$0x1]
        %v678 = vunpack.c.l.b16 %v669
        %v679 = vunpack.c.l.b16 %v670
        %v680 = vunpack.c.l.b16 %v671
        %v681 = vunpack.c.l.b16 %v672
        %v682 = vpack.c.b16 %v679, %v678
        %v683 = vpack.c.b16 %v681, %v680
        %v687 = vsel %vm529, %v668, 0
        %689 = vmatprep.subr.bf16.mxu0 0
        %690 = vmatpush1.bf16.msra.mxu0 %v682
        %691 = vmatprep.subr.bf16.mxu0 0
        %692 = vmatpush1.bf16.msra.mxu0 %v683
        %693 = vmatprep.subr.bf16.mxu0 0
        %694 = vmatpush1.bf16.msra.mxu0 0
        %695 = vmatprep.subr.bf16.mxu0 0
        %696 = vmatpush1.bf16.msra.mxu0 0
        %697 = vmatprep.subr.bf16.mxu0 0
        %698 = vmatpush1.bf16.msra.mxu0 0
        %699 = vmatprep.subr.bf16.mxu0 0
        %700 = vmatpush1.bf16.msra.mxu0 0
        %701 = vmatprep.subr.bf16.mxu0 0
        %702 = vmatpush1.bf16.msra.mxu0 0
        %703 = vmatprep.subr.bf16.mxu0 0
        %704 = vmatpush1.bf16.msra.mxu0 0
        %705 = vmatprep.subr.bf16.mxu0 0
        %706 = vmatpush1.bf16.msra.mxu0 0
        %707 = vmatprep.subr.bf16.mxu0 0
        %708 = vmatpush1.bf16.msra.mxu0 0
        %709 = vmatprep.subr.bf16.mxu0 0
        %710 = vmatpush1.bf16.msra.mxu0 0
        %711 = vmatprep.subr.bf16.mxu0 0
        %712 = vmatpush1.bf16.msra.mxu0 0
        %713 = vmatprep.subr.bf16.mxu0 0
        %714 = vmatpush1.bf16.msra.mxu0 0
        %715 = vmatprep.subr.bf16.mxu0 0
        %716 = vmatpush1.bf16.msra.mxu0 0
        %717 = vmatprep.subr.bf16.mxu0 0
        %718 = vmatpush1.bf16.msra.mxu0 0
        %719 = vmatprep.subr.bf16.mxu0 0
        %720 = vmatpush1.bf16.msra.mxu0 0
        %721 = vmatprep.mubr.bf16.mxu0 0
        %722 = vmatmul.mubr.bf16.gmra.mrb[0].mxu0 %v687
        %v723 = vpop.f32.mrb[0].mxu0
        %v724 = vadd.f32 %v673, %v723
        %v725 = vpop.f32.mrb[0].mxu0
        %v726 = vpop.f32.mrb[0].mxu0
        %v727 = vpop.f32.mrb[0].mxu0
        %728 = vdwg.mxu0
        %v729 = vmax.f32 %v724, 0.0
        %v730 = vpack.c.bf16 %v729, %v729
        %v731 = vld [vmem:[%s8] sm:$0xf]
        %v732 = vld [vmem:[%s8 + $0x4] sm:$0xf]
        %v733 = vld [vmem:[%s8 + $0x8] sm:$0xf]
        %v734 = vld [vmem:[%s8 + $0xc] sm:$0xf]
        %v735 = vld [vmem:[%s9] sm:$0x1]
        %v740 = vunpack.c.l.b16 %v731
        %v741 = vunpack.c.l.b16 %v732
        %v742 = vunpack.c.l.b16 %v733
        %v743 = vunpack.c.l.b16 %v734
        %v744 = vpack.c.b16 %v741, %v740
        %v745 = vpack.c.b16 %v743, %v742
        %v749 = vsel %vm529, %v730, 0
        %751 = vmatprep.subr.bf16.mxu0 0
        %752 = vmatpush1.bf16.msra.mxu0 %v744
        %753 = vmatprep.subr.bf16.mxu0 0
        %754 = vmatpush1.bf16.msra.mxu0 %v745
        %755 = vmatprep.subr.bf16.mxu0 0
        %756 = vmatpush1.bf16.msra.mxu0 0
        %757 = vmatprep.subr.bf16.mxu0 0
        %758 = vmatpush1.bf16.msra.mxu0 0
        %759 = vmatprep.subr.bf16.mxu0 0
        %760 = vmatpush1.bf16.msra.mxu0 0
        %761 = vmatprep.subr.bf16.mxu0 0
        %762 = vmatpush1.bf16.msra.mxu0 0
        %763 = vmatprep.subr.bf16.mxu0 0
        %764 = vmatpush1.bf16.msra.mxu0 0
        %765 = vmatprep.subr.bf16.mxu0 0
        %766 = vmatpush1.bf16.msra.mxu0 0
        %767 = vmatprep.subr.bf16.mxu0 0
        %768 = vmatpush1.bf16.msra.mxu0 0
        %769 = vmatprep.subr.bf16.mxu0 0
        %770 = vmatpush1.bf16.msra.mxu0 0
        %771 = vmatprep.subr.bf16.mxu0 0
        %772 = vmatpush1.bf16.msra.mxu0 0
        %773 = vmatprep.subr.bf16.mxu0 0
        %774 = vmatpush1.bf16.msra.mxu0 0
        %775 = vmatprep.subr.bf16.mxu0 0
        %776 = vmatpush1.bf16.msra.mxu0 0
        %777 = vmatprep.subr.bf16.mxu0 0
        %778 = vmatpush1.bf16.msra.mxu0 0
        %779 = vmatprep.subr.bf16.mxu0 0
        %780 = vmatpush1.bf16.msra.mxu0 0
        %781 = vmatprep.subr.bf16.mxu0 0
        %782 = vmatpush1.bf16.msra.mxu0 0
        %783 = vmatprep.mubr.bf16.mxu0 0
        %784 = vmatmul.mubr.bf16.gmra.mrb[0].mxu0 %v749
        %v785 = vpop.f32.mrb[0].mxu0
        %v786 = vadd.f32 %v735, %v785
        %v787 = vpop.f32.mrb[0].mxu0
        %v788 = vpop.f32.mrb[0].mxu0
        %v789 = vpop.f32.mrb[0].mxu0
        %790 = vdwg.mxu0
        %vm791 = vcmask 57344
        %792 = vst.msk [vmem:[%s420] sm:$0x1] %vm791, %v786
        %s793 = sand.u32 %s256, 1
        %s794 = scalar_lea.sflag [#allocation4], %s793
        %s795 = sand.u32 %s256, 1
        %s796 = scalar_lea.vmem [#allocation8], %s795
        // Predicated region
        $region73: #{tpu_custom_call.1} parent=59 // pred_check
          %p797 = pneg %p266
        $region74: #{tpu_custom_call.1} parent=59 // pred_check_branch
          %799 = sbr.rel (%p797) target = $region76
        $region75: #{tpu_custom_call.1} parent=59 // pred_region
          %s801 = ssub.s32 16, 16
          %802 = vsyncadd %s794, %s801
          %s803 = smul.addr %s28, 16
          %s804 = scalar_lea.hbm %s10, %s803
          %s806 = sshll.u32 %s796, 4
          %s807 = int_to_ptr.vmem [resolvable:$true] %s806
          %809 = dma.vmem_to_hbm [thread:$0]  %s807, 16, %s804, %s794
        $region76: #{tpu_custom_call.1} parent=59 // pred_fallthru
          _
      $region60: #{tpu_custom_call.1} parent=5 // pred_fallthru
        _
      %p810 = scmp.le.s32.totalorder 2, %s23
      // Predicated region
      $region77: #{tpu_custom_call.1} parent=5 // pred_check
        %p811 = pneg %p810
      $region78: #{tpu_custom_call.1} parent=5 // pred_check_branch
        %813 = sbr.rel (%p811) target = $region80
      $region79: #{tpu_custom_call.1} parent=5 // pred_region
        %s814 = ssub.s32 %s23, 2
        // Predicated region
        $region81: #{tpu_custom_call.1} parent=79 // pred_check
          %p815 = pneg %p272
        $region82: #{tpu_custom_call.1} parent=79 // pred_check_branch
          %817 = sbr.rel (%p815) target = $region84
        $region83: #{tpu_custom_call.1} parent=79 // pred_region
          %s818 = sand.u32 %s257, 1
          %s819 = scalar_lea.sflag [#allocation4], %s818
          %s820 = sand.u32 %s257, 1
          %s821 = scalar_lea.vmem [#allocation8], %s820
          %822 = dma.done %s819, 16
        $region84: #{tpu_custom_call.1} parent=79 // pred_fallthru
          _
      $region80: #{tpu_custom_call.1} parent=5 // pred_fallthru
        _
    $region6: #{tpu_custom_call.1} parent=1 // loop_footer
      %s27 = sadd.s32 1, %s23
    $region7: #{tpu_custom_call.1} parent=1 // loop_footer_branch
      %22 = sbr.rel target = $region3
    $region8: #{tpu_custom_call.1} parent=1 // loop_exit
      _
    %823 = vsyncpa [#allocation3], 1
    %s824 = scalar_lea.sflag [#allocation3], 1
    %825 = vsyncpa %s824, 1
    %826 = vsyncpa [#allocation6], 1
    %827 = vsyncpa [#allocation4], 1
    %s828 = scalar_lea.sflag [#allocation4], 1
    %829 = vsyncpa %s828, 1

</llo_original>
